<compile_context>
chip_gen: v5e
topology: v5e:2x2
jax: 0.10.0
libtpu: 0.0.40
codegen_flags: <defaults>
</compile_context>

<pallas_src>
import functools
import math

import jax
import jax.numpy as jnp
from jax import lax
from jax.experimental import pallas as pl
from jax.experimental.pallas import tpu as pltpu


def _layernorm_kernel(x_ref, scale_ref, shift_ref, o_ref, *, eps, d, pack):
    """Normalize each length-`d` segment of each block row.

    x_ref / o_ref: (tile_rows, pack * d)   scale_ref / shift_ref: (1, d)
    pack == 1 is the ordinary one-row-per-block-row case.
    """
    x = x_ref[...].astype(jnp.float32)            # f32 statistics for any dtype
    gamma = scale_ref[...].astype(jnp.float32)    # (1, d)
    beta = shift_ref[...].astype(jnp.float32)     # (1, d)

    if pack == 1:
        mean = jnp.mean(x, axis=-1, keepdims=True)            # XLU reduce
        xc = x - mean
        var = jnp.mean(xc * xc, axis=-1, keepdims=True)       # biased variance
        o_ref[...] = (xc * lax.rsqrt(var + eps) * gamma + beta).astype(o_ref.dtype)
    else:
        # Static unroll over the `pack` segments packed along the 128-lane axis.
        # All extra reduce work is hidden under the HBM DMA (kernel is mem-bound).
        for j in range(pack):
            xj = x[:, j * d:(j + 1) * d]                       # (tile_rows, d)
            mean = jnp.mean(xj, axis=-1, keepdims=True)
            xc = xj - mean
            var = jnp.mean(xc * xc, axis=-1, keepdims=True)
            yj = xc * lax.rsqrt(var + eps) * gamma + beta
            o_ref[:, j * d:(j + 1) * d] = yj.astype(o_ref.dtype)


def layer_norm(x: jax.Array, scale: jax.Array, shift: jax.Array,
               eps: float = 1e-5) -> jax.Array:
    """Pallas implementation of LayerNorm.forward over the last dim."""
    orig_shape = x.shape
    D = orig_shape[-1]
    rows = int(math.prod(orig_shape[:-1]))

    if rows == 0 or D == 0:                       # degenerate/empty input
        return x

    # ---- lane packing: make the block's last (lane) dim dense (=128) --------
    pack = 1
    if D < 128 and (128 % D == 0) and D >= 8:     # D >= 8 bounds the unroll
        k = 128 // D
        if rows % k == 0 and rows >= k:
            pack = k
    lane_d = pack * D
    n_rows = rows // pack

    x2d = x.reshape(n_rows, lane_d)               # contiguous -> free reshape
    scale2d = scale.reshape(1, D)
    shift2d = shift.reshape(1, D)

    itemsize = jnp.dtype(x.dtype).itemsize
    # dtype-aware sublane multiple: 8 (f32), 16 (bf16), 32 (int8/fp8)
    sub = {4: 8, 2: 16, 1: 32}.get(itemsize, 8)

    # ---- generation-aware working-set budget --------------------------------
    try:
        vmem_cap = int(pltpu.get_tpu_info().vmem_capacity_bytes)
    except Exception:
        vmem_cap = 64 << 20                       # conservative (v7x-sized)
    if vmem_cap >= (100 << 20):                   # v5e / v6e: 128 MiB VMEM
        ws_budget, vmem_ceiling = 80 << 20, 96 << 20
    else:                                         # v7x: 64 MiB per TensorCore
        ws_budget, vmem_ceiling = 38 << 20, 46 << 20

    # Per block-row cost: double-buffered in+out tiles plus ~3x f32 intermediates
    # (x upcast / centered / scaled) that Mosaic spills to VMEM for large tiles.
    per_row_bytes = 4 * lane_d * itemsize + 3 * lane_d * 4
    max_tr = max(sub, (ws_budget // per_row_bytes) // sub * sub)
    # NOTE: extremely large D (per-row working set > budget) would need a
    # two-pass split-D kernel; typical emb_dims (<= 32K) fit comfortably.

    # Ensure >= 2 grid steps where possible so both v7x TensorCores get work.
    half = ((-(-n_rows // 2)) + sub - 1) // sub * sub
    tr = max(sub, min(max_tr, half))
    if tr > n_rows:
        tr = n_rows                               # single block == full extent

    # No host-side padding: last block may overhang; Pallas masks its stores and
    # per-row math keeps garbage rows from contaminating valid ones.
    grid = (pl.cdiv(n_rows, tr),)

    tile_bytes = tr * lane_d * itemsize
    f32_work = 3 * tr * lane_d * 4
    vmem_limit = int(min(vmem_ceiling,
                         max(16 << 20, 4 * tile_bytes + f32_work + (2 << 20))))

    out2d = pl.pallas_call(
        functools.partial(_layernorm_kernel, eps=eps, d=D, pack=pack),
        out_shape=jax.ShapeDtypeStruct((n_rows, lane_d), x.dtype),
        grid_spec=pltpu.PrefetchScalarGridSpec(
            num_scalar_prefetch=0,
            grid=grid,
            in_specs=[
                pl.BlockSpec((tr, lane_d), lambda i: (i, 0)),   # x tile
                pl.BlockSpec((1, D), lambda i: (0, 0)),         # scale (resident)
                pl.BlockSpec((1, D), lambda i: (0, 0)),         # shift (resident)
            ],
            out_specs=pl.BlockSpec((tr, lane_d), lambda i: (i, 0)),
        ),
        compiler_params=pltpu.CompilerParams(
            dimension_semantics=("parallel",),
            vmem_limit_bytes=vmem_limit,
        ),
    )(x2d, scale2d, shift2d)

    return out2d.reshape(orig_shape)


if __name__ == "__main__":
    key = jax.random.PRNGKey(0)
    k1, k2, k3, k4 = jax.random.split(key, 4)

    def ref_ln(x, scale, shift, eps=1e-5):
        mean = jnp.mean(x, axis=-1, keepdims=True)
        var = jnp.mean((x - mean) ** 2, axis=-1, keepdims=True)
        return scale * (x - mean) / jnp.sqrt(var + eps) + shift

    # Case 1 (module-sized): (batch, seq, emb_dim) with emb_dim < 128 → packed path.
    B, S, D = 2, 8, 32
    x = jax.random.normal(k1, (B, S, D), dtype=jnp.float32)
    scale = 1.0 + 0.1 * jax.random.normal(k2, (D,), dtype=jnp.float32)
    shift = 0.1 * jax.random.normal(k3, (D,), dtype=jnp.float32)
    y = jax.block_until_ready(layer_norm(x, scale, shift))
    assert y.shape == x.shape and y.dtype == x.dtype
    assert bool(jnp.allclose(y, ref_ln(x, scale, shift), atol=2e-5, rtol=2e-5))

    # Case 2: lane-dense emb_dim, row count not a multiple of the row tile
    # (exercises the unpadded overhanging-last-block path).
    B2, S2, D2 = 3, 5, 128
    x2 = jax.random.normal(k4, (B2, S2, D2), dtype=jnp.float32)
    scale2 = jnp.ones((D2,), jnp.float32)
    shift2 = jnp.zeros((D2,), jnp.float32)
    y2 = jax.block_until_ready(layer_norm(x2, scale2, shift2))
    assert y2.shape == x2.shape and y2.dtype == x2.dtype
    assert bool(jnp.allclose(y2, ref_ln(x2, scale2, shift2), atol=2e-5, rtol=2e-5))

    print("KERNEL_OK")
</pallas_src>

<mosaic_0001>
module attributes {stable_mosaic.version = 11 : i64} {
  func.func @_layernorm_kernel(%arg0: i32, %arg1: memref<4x128xf32, #tpu.memory_space<vmem>>, %arg2: memref<1x32xf32, #tpu.memory_space<vmem>>, %arg3: memref<1x32xf32, #tpu.memory_space<vmem>>, %arg4: memref<4x128xf32, #tpu.memory_space<vmem>>) attributes {dimension_semantics = [#tpu.dimension_semantics<parallel>], iteration_bounds = array<i64: 1>, scalar_prefetch = 0 : i64, scratch_operands = 0 : i64, tpu.core_type = #tpu.core_type<tc>, window_params = [{transform_indices = @transform_0, window_bounds = array<i64: 4, 128>}, {pipeline_mode = #tpu.pipeline_mode<synchronous>, transform_indices = @transform_1, window_bounds = array<i64: 1, 32>}, {pipeline_mode = #tpu.pipeline_mode<synchronous>, transform_indices = @transform_2, window_bounds = array<i64: 1, 32>}, {transform_indices = @transform_3, window_bounds = array<i64: 4, 128>}]} {
    %c0 = arith.constant 0 : index
    %c0_0 = arith.constant 0 : index
    %0 = vector.load %arg1[%c0, %c0_0] : memref<4x128xf32, #tpu.memory_space<vmem>>, vector<4x128xf32>
    %c0_1 = arith.constant 0 : index
    %c0_2 = arith.constant 0 : index
    %1 = vector.load %arg2[%c0_1, %c0_2] : memref<1x32xf32, #tpu.memory_space<vmem>>, vector<1x32xf32>
    %c0_3 = arith.constant 0 : index
    %c0_4 = arith.constant 0 : index
    %2 = vector.load %arg3[%c0_3, %c0_4] : memref<1x32xf32, #tpu.memory_space<vmem>>, vector<1x32xf32>
    %3 = vector.extract_strided_slice %0 {offsets = [0, 0], sizes = [4, 32], strides = [1, 1]} : vector<4x128xf32> to vector<4x32xf32>
    %cst = arith.constant dense<0.000000e+00> : vector<4xf32>
    %4 = vector.multi_reduction <add>, %3, %cst [1] : vector<4x32xf32> to vector<4xf32>
    %5 = vector.shape_cast %4 : vector<4xf32> to vector<4x1xf32>
    %cst_5 = arith.constant 3.200000e+01 : f32
    %6 = vector.broadcast %cst_5 : f32 to vector<4x1xf32>
    %7 = arith.divf %5, %6 : vector<4x1xf32>
    %8 = vector.broadcast %7 : vector<4x1xf32> to vector<4x32xf32>
    %9 = arith.subf %3, %8 : vector<4x32xf32>
    %10 = arith.mulf %9, %9 : vector<4x32xf32>
    %cst_6 = arith.constant dense<0.000000e+00> : vector<4xf32>
    %11 = vector.multi_reduction <add>, %10, %cst_6 [1] : vector<4x32xf32> to vector<4xf32>
    %12 = vector.shape_cast %11 : vector<4xf32> to vector<4x1xf32>
    %cst_7 = arith.constant 3.200000e+01 : f32
    %13 = vector.broadcast %cst_7 : f32 to vector<4x1xf32>
    %14 = arith.divf %12, %13 : vector<4x1xf32>
    %cst_8 = arith.constant 9.99999974E-6 : f32
    %15 = vector.broadcast %cst_8 : f32 to vector<4x1xf32>
    %16 = arith.addf %14, %15 : vector<4x1xf32>
    %17 = math.rsqrt %16 : vector<4x1xf32>
    %18 = vector.broadcast %17 : vector<4x1xf32> to vector<4x32xf32>
    %19 = arith.mulf %9, %18 : vector<4x32xf32>
    %20 = vector.broadcast %1 : vector<1x32xf32> to vector<4x32xf32>
    %21 = arith.mulf %19, %20 : vector<4x32xf32>
    %22 = vector.broadcast %2 : vector<1x32xf32> to vector<4x32xf32>
    %23 = arith.addf %21, %22 : vector<4x32xf32>
    %c0_9 = arith.constant 0 : index
    %c0_10 = arith.constant 0 : index
    %24 = vector.load %arg4[%c0_9, %c0_10] : memref<4x128xf32, #tpu.memory_space<vmem>>, vector<4x32xf32>
    tpu.vector_store %arg4[%c0_9, %c0_10], %23 {strides = array<i32>} : memref<4x128xf32, #tpu.memory_space<vmem>>, vector<4x32xf32>,
    %25 = vector.extract_strided_slice %0 {offsets = [0, 32], sizes = [4, 32], strides = [1, 1]} : vector<4x128xf32> to vector<4x32xf32>
    %cst_11 = arith.constant dense<0.000000e+00> : vector<4xf32>
    %26 = vector.multi_reduction <add>, %25, %cst_11 [1] : vector<4x32xf32> to vector<4xf32>
    %27 = vector.shape_cast %26 : vector<4xf32> to vector<4x1xf32>
    %cst_12 = arith.constant 3.200000e+01 : f32
    %28 = vector.broadcast %cst_12 : f32 to vector<4x1xf32>
    %29 = arith.divf %27, %28 : vector<4x1xf32>
    %30 = vector.broadcast %29 : vector<4x1xf32> to vector<4x32xf32>
    %31 = arith.subf %25, %30 : vector<4x32xf32>
    %32 = arith.mulf %31, %31 : vector<4x32xf32>
    %cst_13 = arith.constant dense<0.000000e+00> : vector<4xf32>
    %33 = vector.multi_reduction <add>, %32, %cst_13 [1] : vector<4x32xf32> to vector<4xf32>
    %34 = vector.shape_cast %33 : vector<4xf32> to vector<4x1xf32>
    %cst_14 = arith.constant 3.200000e+01 : f32
    %35 = vector.broadcast %cst_14 : f32 to vector<4x1xf32>
    %36 = arith.divf %34, %35 : vector<4x1xf32>
    %cst_15 = arith.constant 9.99999974E-6 : f32
    %37 = vector.broadcast %cst_15 : f32 to vector<4x1xf32>
    %38 = arith.addf %36, %37 : vector<4x1xf32>
    %39 = math.rsqrt %38 : vector<4x1xf32>
    %40 = vector.broadcast %39 : vector<4x1xf32> to vector<4x32xf32>
    %41 = arith.mulf %31, %40 : vector<4x32xf32>
    %42 = vector.broadcast %1 : vector<1x32xf32> to vector<4x32xf32>
    %43 = arith.mulf %41, %42 : vector<4x32xf32>
    %44 = vector.broadcast %2 : vector<1x32xf32> to vector<4x32xf32>
    %45 = arith.addf %43, %44 : vector<4x32xf32>
    %c0_16 = arith.constant 0 : index
    %c32 = arith.constant 32 : index
    %46 = vector.load %arg4[%c0_16, %c32] : memref<4x128xf32, #tpu.memory_space<vmem>>, vector<4x32xf32>
    tpu.vector_store %arg4[%c0_16, %c32], %45 {strides = array<i32>} : memref<4x128xf32, #tpu.memory_space<vmem>>, vector<4x32xf32>,
    %47 = vector.extract_strided_slice %0 {offsets = [0, 64], sizes = [4, 32], strides = [1, 1]} : vector<4x128xf32> to vector<4x32xf32>
    %cst_17 = arith.constant dense<0.000000e+00> : vector<4xf32>
    %48 = vector.multi_reduction <add>, %47, %cst_17 [1] : vector<4x32xf32> to vector<4xf32>
    %49 = vector.shape_cast %48 : vector<4xf32> to vector<4x1xf32>
    %cst_18 = arith.constant 3.200000e+01 : f32
    %50 = vector.broadcast %cst_18 : f32 to vector<4x1xf32>
    %51 = arith.divf %49, %50 : vector<4x1xf32>
    %52 = vector.broadcast %51 : vector<4x1xf32> to vector<4x32xf32>
    %53 = arith.subf %47, %52 : vector<4x32xf32>
    %54 = arith.mulf %53, %53 : vector<4x32xf32>
    %cst_19 = arith.constant dense<0.000000e+00> : vector<4xf32>
    %55 = vector.multi_reduction <add>, %54, %cst_19 [1] : vector<4x32xf32> to vector<4xf32>
    %56 = vector.shape_cast %55 : vector<4xf32> to vector<4x1xf32>
    %cst_20 = arith.constant 3.200000e+01 : f32
    %57 = vector.broadcast %cst_20 : f32 to vector<4x1xf32>
    %58 = arith.divf %56, %57 : vector<4x1xf32>
    %cst_21 = arith.constant 9.99999974E-6 : f32
    %59 = vector.broadcast %cst_21 : f32 to vector<4x1xf32>
    %60 = arith.addf %58, %59 : vector<4x1xf32>
    %61 = math.rsqrt %60 : vector<4x1xf32>
    %62 = vector.broadcast %61 : vector<4x1xf32> to vector<4x32xf32>
    %63 = arith.mulf %53, %62 : vector<4x32xf32>
    %64 = vector.broadcast %1 : vector<1x32xf32> to vector<4x32xf32>
    %65 = arith.mulf %63, %64 : vector<4x32xf32>
    %66 = vector.broadcast %2 : vector<1x32xf32> to vector<4x32xf32>
    %67 = arith.addf %65, %66 : vector<4x32xf32>
    %c0_22 = arith.constant 0 : index
    %c64 = arith.constant 64 : index
    %68 = vector.load %arg4[%c0_22, %c64] : memref<4x128xf32, #tpu.memory_space<vmem>>, vector<4x32xf32>
    tpu.vector_store %arg4[%c0_22, %c64], %67 {strides = array<i32>} : memref<4x128xf32, #tpu.memory_space<vmem>>, vector<4x32xf32>,
    %69 = vector.extract_strided_slice %0 {offsets = [0, 96], sizes = [4, 32], strides = [1, 1]} : vector<4x128xf32> to vector<4x32xf32>
    %cst_23 = arith.constant dense<0.000000e+00> : vector<4xf32>
    %70 = vector.multi_reduction <add>, %69, %cst_23 [1] : vector<4x32xf32> to vector<4xf32>
    %71 = vector.shape_cast %70 : vector<4xf32> to vector<4x1xf32>
    %cst_24 = arith.constant 3.200000e+01 : f32
    %72 = vector.broadcast %cst_24 : f32 to vector<4x1xf32>
    %73 = arith.divf %71, %72 : vector<4x1xf32>
    %74 = vector.broadcast %73 : vector<4x1xf32> to vector<4x32xf32>
    %75 = arith.subf %69, %74 : vector<4x32xf32>
    %76 = arith.mulf %75, %75 : vector<4x32xf32>
    %cst_25 = arith.constant dense<0.000000e+00> : vector<4xf32>
    %77 = vector.multi_reduction <add>, %76, %cst_25 [1] : vector<4x32xf32> to vector<4xf32>
    %78 = vector.shape_cast %77 : vector<4xf32> to vector<4x1xf32>
    %cst_26 = arith.constant 3.200000e+01 : f32
    %79 = vector.broadcast %cst_26 : f32 to vector<4x1xf32>
    %80 = arith.divf %78, %79 : vector<4x1xf32>
    %cst_27 = arith.constant 9.99999974E-6 : f32
    %81 = vector.broadcast %cst_27 : f32 to vector<4x1xf32>
    %82 = arith.addf %80, %81 : vector<4x1xf32>
    %83 = math.rsqrt %82 : vector<4x1xf32>
    %84 = vector.broadcast %83 : vector<4x1xf32> to vector<4x32xf32>
    %85 = arith.mulf %75, %84 : vector<4x32xf32>
    %86 = vector.broadcast %1 : vector<1x32xf32> to vector<4x32xf32>
    %87 = arith.mulf %85, %86 : vector<4x32xf32>
    %88 = vector.broadcast %2 : vector<1x32xf32> to vector<4x32xf32>
    %89 = arith.addf %87, %88 : vector<4x32xf32>
    %c0_28 = arith.constant 0 : index
    %c96 = arith.constant 96 : index
    %90 = vector.load %arg4[%c0_28, %c96] : memref<4x128xf32, #tpu.memory_space<vmem>>, vector<4x32xf32>
    tpu.vector_store %arg4[%c0_28, %c96], %89 {strides = array<i32>} : memref<4x128xf32, #tpu.memory_space<vmem>>, vector<4x32xf32>,
    return
  }
  func.func @transform_0(%arg0: i32) -> (i32, i32) {
    %c0_i32 = arith.constant 0 : i32
    %c0_i32_0 = arith.constant 0 : i32
    return %arg0, %c0_i32 : i32, i32
  }
  func.func @transform_1(%arg0: i32) -> (i32, i32) {
    %c0_i32 = arith.constant 0 : i32
    %c0_i32_0 = arith.constant 0 : i32
    %c0_i32_1 = arith.constant 0 : i32
    return %c0_i32, %c0_i32_0 : i32, i32
  }
  func.func @transform_2(%arg0: i32) -> (i32, i32) {
    %c0_i32 = arith.constant 0 : i32
    %c0_i32_0 = arith.constant 0 : i32
    %c0_i32_1 = arith.constant 0 : i32
    return %c0_i32, %c0_i32_0 : i32, i32
  }
  func.func @transform_3(%arg0: i32) -> (i32, i32) {
    %c0_i32 = arith.constant 0 : i32
    %c0_i32_0 = arith.constant 0 : i32
    return %arg0, %c0_i32 : i32, i32
  }
}

</mosaic_0001>

<llo_original>
// kernel: tpu_custom_call.1
$region0: #{tpu_custom_call.1}
  #allocation0 [shape = 'u32[]', space=smem, size = 0x4, offset = 0x4, fixed_abs, tag = 'smem constant byte address 0x4 - core index']
  #allocation1 [shape = 'u32[72,128]{1,0:T(1,128)}', space=vmem, size = 0x9000, scoped, tag = 'internal scratch']
  %s0 = inlined_call_operand.hbm [shape: f32[4,128], index: 0, kind: input, shape index: {}]
  %s1 = inlined_call_operand.hbm [shape: f32[1,32], index: 1, kind: input, shape index: {}]
  %s2 = inlined_call_operand.vmem [shape: f32[1,32], index: 2, kind: input, shape index: {}]
  %s3 = inlined_call_operand.hbm [shape: f32[4,128], index: 3, kind: output, shape index: {}]
  %s4 = sld [smem:[#allocation0]]
  $region30: #{tpu_custom_call.1} parent=0
    _
  %s6 = ssub.s32 1, %s4
  %s7 = scalar_select 0, %s6, %s4
  $region1: #{tpu_custom_call.1} parent=0
    #allocation2 [shape = 'u8[2048]{0}', space=vmem, size = 0x800, scoped, tag = 'input window, operand 0, single buffered']
    #allocation3 [shape = 's32[1]{0}', space=sflag, size = 0x4, scoped, tag = 'scoped memory for tpu_custom_call.1']
    #allocation4 [shape = 's32[1]{0}', space=sflag, size = 0x4, scoped, tag = 'scoped memory for tpu_custom_call.1']
    #allocation5 [shape = 'u8[512]{0}', space=vmem, size = 0x400, scoped, tag = 'input window, operand 1, single buffered']
    #allocation6 [shape = 's32[1]{0}', space=sflag, size = 0x4, scoped, tag = 'scoped memory for tpu_custom_call.1']
    #allocation7 [shape = 'u8[2048]{0}', space=vmem, size = 0x800, scoped, tag = 'output window, operand 0, single buffered']
    %8 = vsyncpa [#allocation3], 0
    %9 = vsyncpa [#allocation6], 0
    %10 = vsyncpa [#allocation4], 0
    // Predicated region
    $region2: #{tpu_custom_call.1} parent=1 // pred_check
      _
    $region3: #{tpu_custom_call.1} parent=1 // pred_check_branch
      %12 = sbr.rel (0) target = $region5
    $region4: #{tpu_custom_call.1} parent=1 // pred_region
      %14 = vsyncadd [#allocation3], 0
      %s16 = sshll.u32 %s0, 4
      %s17 = int_to_ptr.hbm [resolvable:$true] %s16
      %s18 = sshll.u32 [#allocation2], 4
      %s19 = int_to_ptr.vmem [resolvable:$true] %s18
      %21 = dma.hbm_to_vmem [thread:$0]  %s17, 64, %s19, [#allocation3]
    $region5: #{tpu_custom_call.1} parent=1 // pred_fallthru
      _
    // Predicated region
    $region6: #{tpu_custom_call.1} parent=1 // pred_check
      _
    $region7: #{tpu_custom_call.1} parent=1 // pred_check_branch
      %23 = sbr.rel (0) target = $region9
    $region8: #{tpu_custom_call.1} parent=1 // pred_region
      %25 = vsyncadd [#allocation6], 0
      %s27 = sshll.u32 %s1, 4
      %s28 = int_to_ptr.hbm [resolvable:$true] %s27
      %s29 = sshll.u32 [#allocation5], 4
      %s30 = int_to_ptr.vmem [resolvable:$true] %s29
      %32 = dma.hbm_to_vmem [thread:$0]  %s28, 16, %s30, [#allocation6]
    $region9: #{tpu_custom_call.1} parent=1 // pred_fallthru
      _
    // Predicated region
    $region10: #{tpu_custom_call.1} parent=1 // pred_check
      _
    $region11: #{tpu_custom_call.1} parent=1 // pred_check_branch
      %34 = sbr.rel (0) target = $region13
    $region12: #{tpu_custom_call.1} parent=1 // pred_region
      _
    $region13: #{tpu_custom_call.1} parent=1 // pred_fallthru
      _
    // Predicated region
    $region14: #{tpu_custom_call.1} parent=1 // pred_check
      _
    $region15: #{tpu_custom_call.1} parent=1 // pred_check_branch
      %36 = sbr.rel (0) target = $region17
    $region16: #{tpu_custom_call.1} parent=1 // pred_region
      %38 = dma.done [#allocation3], 64
    $region17: #{tpu_custom_call.1} parent=1 // pred_fallthru
      _
    // Predicated region
    $region18: #{tpu_custom_call.1} parent=1 // pred_check
      _
    $region19: #{tpu_custom_call.1} parent=1 // pred_check_branch
      %40 = sbr.rel (0) target = $region21
    $region20: #{tpu_custom_call.1} parent=1 // pred_region
      %42 = dma.done [#allocation6], 16
    $region21: #{tpu_custom_call.1} parent=1 // pred_fallthru
      _
    %v43 = vld [vmem:[#allocation2] sm:$0xf]
    %v44 = vld [vmem:[#allocation5] sm:$0x1]
    %v45 = vld [vmem:[%s2] sm:$0x1]
    %vm46 = vcmask 257024
    %v47 = vsel %vm46, %v43, 0.0
    %48 = vadd.xlane.f32.xlu0 %v47
    %v49 = vpop.xlane.xlu0 %48
    %v50 = vrcp.pop 32.0
    %v51 = vmul.f32 32.0, %v50
    %v52 = vsub.f32 1.0, %v51
    %v53 = vmul.f32 %v50, %v52
    %v54 = vadd.f32 %v50, %v53
    %vm55 = vweird.f32 %v50
    %v56 = vsel %vm55, %v50, %v54
    %v57 = vmul.f32 %v49, %v56
    %v58 = vsub.f32 %v43, %v57
    %v59 = vmul.f32 %v58, %v58
    %v60 = vsel %vm46, %v59, 0.0
    %61 = vadd.xlane.f32.xlu0 %v60
    %v62 = vpop.xlane.xlu0 %61
    %v63 = vmul.f32 %v62, %v56
    %v64 = vadd.f32 %v63, 1e-05
    %v65 = vrsqrt.pop %v64
    %v66 = vmul.f32 %v65, %v64
    %v67 = vmul.f32 %v66, %v65
    %v68 = vmul.f32 0.5, %v67
    %v69 = vsub.f32 1.5, %v68
    %v70 = vmul.f32 %v65, %v69
    %vm71 = vweird.f32 %v64
    %vm72 = vweird.f32 %v65
    %vm73 = vmor %vm71, %vm72
    %v74 = vsel %vm73, %v65, %v70
    %v75 = vmul.f32 %v58, %v74
    %v77 = vperm.slane %v44, 0
    %v79 = vmul.f32 %v75, %v77
    %v81 = vperm.slane %v45, 0
    %v83 = vadd.f32 %v79, %v81
    %84 = vst.msk [vmem:[#allocation7] sm:$0xf] %vm46, %v83
    %86 = vrot.lane.b32.xlu0 %v43, 96
    %v87 = vpop.permute.xlu0 %86
    %v89 = vsel %vm46, %v87, 0.0
    %90 = vadd.xlane.f32.xlu0 %v89
    %v91 = vpop.xlane.xlu0 %90
    %v92 = vmul.f32 %v91, %v56
    %v93 = vsub.f32 %v43, %v92
    %v94 = vmul.f32 %v93, %v93
    %96 = vrot.lane.b32.xlu0 %v94, 96
    %v97 = vpop.permute.xlu0 %96
    %v99 = vsel %vm46, %v97, 0.0
    %100 = vadd.xlane.f32.xlu0 %v99
    %v101 = vpop.xlane.xlu0 %100
    %v102 = vmul.f32 %v101, %v56
    %v103 = vadd.f32 %v102, 1e-05
    %v104 = vrsqrt.pop %v103
    %v105 = vmul.f32 %v104, %v103
    %v106 = vmul.f32 %v105, %v104
    %v107 = vmul.f32 0.5, %v106
    %v108 = vsub.f32 1.5, %v107
    %v109 = vmul.f32 %v104, %v108
    %vm110 = vweird.f32 %v103
    %vm111 = vweird.f32 %v104
    %vm112 = vmor %vm110, %vm111
    %v113 = vsel %vm112, %v104, %v109
    %v114 = vmul.f32 %v93, %v113
    %115 = vrot.lane.b32.xlu0 %v77, 32
    %v116 = vpop.permute.xlu0 %115
    %v118 = vmul.f32 %v114, %v116
    %119 = vrot.lane.b32.xlu0 %v81, 32
    %v120 = vpop.permute.xlu0 %119
    %v122 = vadd.f32 %v118, %v120
    %vm123 = vcmask 519424
    %124 = vst.msk [vmem:[#allocation7] sm:$0xf] %vm123, %v122
    %125 = vrot.lane.b32.xlu0 %v43, 64
    %v126 = vpop.permute.xlu0 %125
    %v128 = vsel %vm46, %v126, 0.0
    %129 = vadd.xlane.f32.xlu0 %v128
    %v130 = vpop.xlane.xlu0 %129
    %v131 = vmul.f32 %v130, %v56
    %v132 = vsub.f32 %v43, %v131
    %v133 = vmul.f32 %v132, %v132
    %135 = vrot.lane.b32.xlu0 %v133, 64
    %v136 = vpop.permute.xlu0 %135
    %v138 = vsel %vm46, %v136, 0.0
    %139 = vadd.xlane.f32.xlu0 %v138
    %v140 = vpop.xlane.xlu0 %139
    %v141 = vmul.f32 %v140, %v56
    %v142 = vadd.f32 %v141, 1e-05
    %v143 = vrsqrt.pop %v142
    %v144 = vmul.f32 %v143, %v142
    %v145 = vmul.f32 %v144, %v143
    %v146 = vmul.f32 0.5, %v145
    %v147 = vsub.f32 1.5, %v146
    %v148 = vmul.f32 %v143, %v147
    %vm149 = vweird.f32 %v142
    %vm150 = vweird.f32 %v143
    %vm151 = vmor %vm149, %vm150
    %v152 = vsel %vm151, %v143, %v148
    %v153 = vmul.f32 %v132, %v152
    %154 = vrot.lane.b32.xlu0 %v77, 64
    %v155 = vpop.permute.xlu0 %154
    %v157 = vmul.f32 %v153, %v155
    %158 = vrot.lane.b32.xlu0 %v81, 64
    %v159 = vpop.permute.xlu0 %158
    %v161 = vadd.f32 %v157, %v159
    %vm162 = vcmask 781824
    %163 = vst.msk [vmem:[#allocation7] sm:$0xf] %vm162, %v161
    %164 = vrot.lane.b32.xlu0 %v43, 32
    %v165 = vpop.permute.xlu0 %164
    %v167 = vsel %vm46, %v165, 0.0
    %168 = vadd.xlane.f32.xlu0 %v167
    %v169 = vpop.xlane.xlu0 %168
    %v170 = vmul.f32 %v169, %v56
    %v171 = vsub.f32 %v43, %v170
    %v172 = vmul.f32 %v171, %v171
    %174 = vrot.lane.b32.xlu0 %v172, 32
    %v175 = vpop.permute.xlu0 %174
    %v177 = vsel %vm46, %v175, 0.0
    %178 = vadd.xlane.f32.xlu0 %v177
    %v179 = vpop.xlane.xlu0 %178
    %v180 = vmul.f32 %v179, %v56
    %v181 = vadd.f32 %v180, 1e-05
    %v182 = vrsqrt.pop %v181
    %v183 = vmul.f32 %v182, %v181
    %v184 = vmul.f32 %v183, %v182
    %v185 = vmul.f32 0.5, %v184
    %v186 = vsub.f32 1.5, %v185
    %v187 = vmul.f32 %v182, %v186
    %vm188 = vweird.f32 %v181
    %vm189 = vweird.f32 %v182
    %vm190 = vmor %vm188, %vm189
    %v191 = vsel %vm190, %v182, %v187
    %v192 = vmul.f32 %v171, %v191
    %193 = vrot.lane.b32.xlu0 %v77, 96
    %v194 = vpop.permute.xlu0 %193
    %v196 = vmul.f32 %v192, %v194
    %197 = vrot.lane.b32.xlu0 %v81, 96
    %v198 = vpop.permute.xlu0 %197
    %v200 = vadd.f32 %v196, %v198
    %vm201 = vcmask 1044224
    %202 = vst.msk [vmem:[#allocation7] sm:$0xf] %vm201, %v200
    // Predicated region
    $region22: #{tpu_custom_call.1} parent=1 // pred_check
      _
    $region23: #{tpu_custom_call.1} parent=1 // pred_check_branch
      %204 = sbr.rel (0) target = $region25
    $region24: #{tpu_custom_call.1} parent=1 // pred_region
      %206 = vsyncadd [#allocation4], 0
      %s208 = sshll.u32 [#allocation7], 4
      %s209 = int_to_ptr.vmem [resolvable:$true] %s208
      %s210 = sshll.u32 %s3, 4
      %s211 = int_to_ptr.hbm [resolvable:$true] %s210
      %213 = dma.vmem_to_hbm [thread:$0]  %s209, 64, %s211, [#allocation4]
    $region25: #{tpu_custom_call.1} parent=1 // pred_fallthru
      _
    // Predicated region
    $region26: #{tpu_custom_call.1} parent=1 // pred_check
      _
    $region27: #{tpu_custom_call.1} parent=1 // pred_check_branch
      %215 = sbr.rel (0) target = $region29
    $region28: #{tpu_custom_call.1} parent=1 // pred_region
      %217 = dma.done [#allocation4], 64
    $region29: #{tpu_custom_call.1} parent=1 // pred_fallthru
      _
    %218 = vsyncpa [#allocation3], 1
    %219 = vsyncpa [#allocation6], 1
    %220 = vsyncpa [#allocation4], 1

</llo_original>
